<compile_context>
chip_gen: v5e
topology: v5e:2x2
jax: 0.10.0
libtpu: 0.0.40
codegen_flags: <defaults>
</compile_context>

<pallas_src>
import functools

import jax
import jax.numpy as jnp
from jax.experimental import pallas as pl
from jax.experimental.pallas import tpu as pltpu


def _round_up(x: int, m: int) -> int:
    return (x + m - 1) // m * m


def _fused_decoder_kernel(*refs, num_linear: int):
    """refs = (x_ref, w1, b1, w2, b2, ..., wL, bL, o_ref).

    Chains all linear layers in-register/in-VMEM; only the final activation is
    stored.  ReLU on every layer except the last (matches FCDecoder.forward).
    """
    x_ref = refs[0]
    o_ref = refs[-1]
    h = x_ref[...]
    for l in range(num_linear):
        w_ref = refs[1 + 2 * l]
        b_ref = refs[2 + 2 * l]
        h = jnp.dot(h, w_ref[...], preferred_element_type=jnp.float32)
        h = h + b_ref[...]                      # b is (1, N) -> broadcast over rows
        if l != num_linear - 1:
            h = jnp.maximum(h, 0.0)
    o_ref[...] = h.astype(o_ref.dtype)


def fc_decoder_forward(x, params, output_size):
    """Fused forward pass.  params = [(w0, b0), (w1, b1), ...] with w: (K, N)."""
    B, K0 = x.shape
    num_linear = len(params)
    n_last = params[-1][0].shape[1]

    # Pad batch to a sublane multiple and pick a batch tile (<= 256 rows/pass).
    tile_b = min(_round_up(B, 8), 256)
    b_pad = _round_up(B, tile_b)
    if b_pad != B:
        x = jnp.pad(x, ((0, b_pad - B), (0, 0)))
    grid = (b_pad // tile_b,)

    # BlockSpecs: batch tile marches with the grid; weights/biases are resident
    # (full-array blocks, constant index_map).
    in_specs = [pl.BlockSpec((tile_b, K0), lambda i: (i, 0))]
    flat_inputs = [x]
    for (w, b) in params:
        k, n = w.shape
        in_specs.append(pl.BlockSpec((k, n), lambda i: (0, 0)))
        in_specs.append(pl.BlockSpec((1, n), lambda i: (0, 0)))
        flat_inputs.append(w)
        flat_inputs.append(b.reshape(1, n))
    out_spec = pl.BlockSpec((tile_b, n_last), lambda i: (i, 0))

    # Advisory cost estimate (tiny kernel -> lets XLA schedule/overlap it well).
    flops = 2 * b_pad * sum(w.shape[0] * w.shape[1] for w, _ in params)
    bytes_accessed = 4 * (
        b_pad * K0
        + sum(w.size + b.size for w, b in params)
        + b_pad * n_last
    )
    cost = pl.CostEstimate(flops=flops, transcendentals=0,
                           bytes_accessed=bytes_accessed)

    kernel = functools.partial(_fused_decoder_kernel, num_linear=num_linear)
    out = pl.pallas_call(
        kernel,
        out_shape=jax.ShapeDtypeStruct((b_pad, n_last), x.dtype),
        grid=grid,
        in_specs=in_specs,
        out_specs=out_spec,
        compiler_params=pltpu.CompilerParams(
            dimension_semantics=("parallel",),   # shards batch tiles across v7x's 2 TCs
        ),
        cost_estimate=cost,
    )(*flat_inputs)

    out = out[:B]                                # drop batch padding rows
    # .view(output_size) in PyTorch == reshape (glue, not the hot path).
    return out.reshape(output_size)


class FCDecoderPallas:
    """Mirrors prednet.deterministic.models.FCDecoder.forward."""

    def __init__(self, dec_layer_size, key):
        self.num_layers = len(dec_layer_size)
        self.dec_layer_size = tuple(dec_layer_size)
        self.params = []
        for layer in range(self.num_layers - 1):
            fan_in = dec_layer_size[layer]
            fan_out = dec_layer_size[layer + 1]
            key, kw, kb = jax.random.split(key, 3)
            bound = 1.0 / jnp.sqrt(jnp.float32(fan_in))
            # PyTorch nn.Linear default init: U(-1/sqrt(fan_in), 1/sqrt(fan_in)).
            w = jax.random.uniform(kw, (fan_in, fan_out), jnp.float32,
                                   minval=-bound, maxval=bound)
            b = jax.random.uniform(kb, (fan_out,), jnp.float32,
                                   minval=-bound, maxval=bound)
            self.params.append((w, b))

    def __call__(self, x, output_size):
        return fc_decoder_forward(x, self.params, output_size)


def _reference(decoder, x, output_size):
    dec = x
    for layer in range(1, decoder.num_layers):
        w, b = decoder.params[layer - 1]
        dec = dec @ w + b
        if layer != decoder.num_layers - 1:
            dec = jnp.maximum(dec, 0.0)
    return dec.reshape(output_size)


if __name__ == "__main__":
    key = jax.random.PRNGKey(0)
    kparam, kinput = jax.random.split(key)

    dec_layer_size = (32, 64, 48, 16)   # decoder unit sizes per layer
    batch = 2
    output_size = (batch, 4, 4)         # 16 output features reshaped to 4x4

    decoder = FCDecoderPallas(dec_layer_size, kparam)
    x = jax.random.normal(kinput, (batch, dec_layer_size[0]), jnp.float32)

    out = decoder(x, output_size)
    out = jax.block_until_ready(out)

    ref = _reference(decoder, x, output_size)
    assert out.shape == tuple(output_size)
    assert jnp.allclose(out, ref, atol=1e-5, rtol=1e-5)

    print("KERNEL_OK")
</pallas_src>

<mosaic_0001>
module attributes {stable_mosaic.version = 11 : i64} {
  func.func @_fused_decoder_kernel(%arg0: i32, %arg1: memref<8x32xf32, #tpu.memory_space<vmem>>, %arg2: memref<32x64xf32, #tpu.memory_space<vmem>>, %arg3: memref<1x64xf32, #tpu.memory_space<vmem>>, %arg4: memref<64x48xf32, #tpu.memory_space<vmem>>, %arg5: memref<1x48xf32, #tpu.memory_space<vmem>>, %arg6: memref<48x16xf32, #tpu.memory_space<vmem>>, %arg7: memref<1x16xf32, #tpu.memory_space<vmem>>, %arg8: memref<8x16xf32, #tpu.memory_space<vmem>>) attributes {dimension_semantics = [#tpu.dimension_semantics<parallel>], iteration_bounds = array<i64: 1>, scalar_prefetch = 0 : i64, scratch_operands = 0 : i64, tpu.core_type = #tpu.core_type<tc>, window_params = [{transform_indices = @transform_0, window_bounds = array<i64: 8, 32>}, {pipeline_mode = #tpu.pipeline_mode<synchronous>, transform_indices = @transform_1, window_bounds = array<i64: 32, 64>}, {pipeline_mode = #tpu.pipeline_mode<synchronous>, transform_indices = @transform_2, window_bounds = array<i64: 1, 64>}, {pipeline_mode = #tpu.pipeline_mode<synchronous>, transform_indices = @transform_3, window_bounds = array<i64: 64, 48>}, {pipeline_mode = #tpu.pipeline_mode<synchronous>, transform_indices = @transform_4, window_bounds = array<i64: 1, 48>}, {pipeline_mode = #tpu.pipeline_mode<synchronous>, transform_indices = @transform_5, window_bounds = array<i64: 48, 16>}, {pipeline_mode = #tpu.pipeline_mode<synchronous>, transform_indices = @transform_6, window_bounds = array<i64: 1, 16>}, {transform_indices = @transform_7, window_bounds = array<i64: 8, 16>}]} {
    %c0 = arith.constant 0 : index
    %c0_0 = arith.constant 0 : index
    %0 = vector.load %arg1[%c0, %c0_0] : memref<8x32xf32, #tpu.memory_space<vmem>>, vector<8x32xf32>
    %c0_1 = arith.constant 0 : index
    %c0_2 = arith.constant 0 : index
    %1 = vector.load %arg2[%c0_1, %c0_2] : memref<32x64xf32, #tpu.memory_space<vmem>>, vector<32x64xf32>
    %cst = arith.constant dense<0.000000e+00> : vector<8x64xf32>
    %2 = tpu.matmul %0, %1, %cst {dimension_numbers = #tpu.dot_dimension_numbers<[1], [0], [0], [1], [0, 0, 1, 1], [], []>} : vector<8x32xf32>, vector<32x64xf32>, vector<8x64xf32> -> vector<8x64xf32>
    %c0_3 = arith.constant 0 : index
    %c0_4 = arith.constant 0 : index
    %3 = vector.load %arg3[%c0_3, %c0_4] : memref<1x64xf32, #tpu.memory_space<vmem>>, vector<1x64xf32>
    %4 = vector.broadcast %3 : vector<1x64xf32> to vector<8x64xf32>
    %5 = arith.addf %2, %4 : vector<8x64xf32>
    %cst_5 = arith.constant 0.000000e+00 : f32
    %6 = vector.broadcast %cst_5 : f32 to vector<8x64xf32>
    %7 = arith.maximumf %5, %6 : vector<8x64xf32>
    %c0_6 = arith.constant 0 : index
    %c0_7 = arith.constant 0 : index
    %8 = vector.load %arg4[%c0_6, %c0_7] : memref<64x48xf32, #tpu.memory_space<vmem>>, vector<64x48xf32>
    %cst_8 = arith.constant dense<0.000000e+00> : vector<8x48xf32>
    %9 = tpu.matmul %7, %8, %cst_8 {dimension_numbers = #tpu.dot_dimension_numbers<[1], [0], [0], [1], [0, 0, 1, 1], [], []>} : vector<8x64xf32>, vector<64x48xf32>, vector<8x48xf32> -> vector<8x48xf32>
    %c0_9 = arith.constant 0 : index
    %c0_10 = arith.constant 0 : index
    %10 = vector.load %arg5[%c0_9, %c0_10] : memref<1x48xf32, #tpu.memory_space<vmem>>, vector<1x48xf32>
    %11 = vector.broadcast %10 : vector<1x48xf32> to vector<8x48xf32>
    %12 = arith.addf %9, %11 : vector<8x48xf32>
    %cst_11 = arith.constant 0.000000e+00 : f32
    %13 = vector.broadcast %cst_11 : f32 to vector<8x48xf32>
    %14 = arith.maximumf %12, %13 : vector<8x48xf32>
    %c0_12 = arith.constant 0 : index
    %c0_13 = arith.constant 0 : index
    %15 = vector.load %arg6[%c0_12, %c0_13] : memref<48x16xf32, #tpu.memory_space<vmem>>, vector<48x16xf32>
    %cst_14 = arith.constant dense<0.000000e+00> : vector<8x16xf32>
    %16 = tpu.matmul %14, %15, %cst_14 {dimension_numbers = #tpu.dot_dimension_numbers<[1], [0], [0], [1], [0, 0, 1, 1], [], []>} : vector<8x48xf32>, vector<48x16xf32>, vector<8x16xf32> -> vector<8x16xf32>
    %c0_15 = arith.constant 0 : index
    %c0_16 = arith.constant 0 : index
    %17 = vector.load %arg7[%c0_15, %c0_16] : memref<1x16xf32, #tpu.memory_space<vmem>>, vector<1x16xf32>
    %18 = vector.broadcast %17 : vector<1x16xf32> to vector<8x16xf32>
    %19 = arith.addf %16, %18 : vector<8x16xf32>
    %c0_17 = arith.constant 0 : index
    %c0_18 = arith.constant 0 : index
    %20 = vector.load %arg8[%c0_17, %c0_18] : memref<8x16xf32, #tpu.memory_space<vmem>>, vector<8x16xf32>
    tpu.vector_store %arg8[%c0_17, %c0_18], %19 {strides = array<i32>} : memref<8x16xf32, #tpu.memory_space<vmem>>, vector<8x16xf32>,
    return
  }
  func.func @transform_0(%arg0: i32) -> (i32, i32) {
    %c0_i32 = arith.constant 0 : i32
    %c0_i32_0 = arith.constant 0 : i32
    return %arg0, %c0_i32 : i32, i32
  }
  func.func @transform_1(%arg0: i32) -> (i32, i32) {
    %c0_i32 = arith.constant 0 : i32
    %c0_i32_0 = arith.constant 0 : i32
    %c0_i32_1 = arith.constant 0 : i32
    return %c0_i32, %c0_i32_0 : i32, i32
  }
  func.func @transform_2(%arg0: i32) -> (i32, i32) {
    %c0_i32 = arith.constant 0 : i32
    %c0_i32_0 = arith.constant 0 : i32
    %c0_i32_1 = arith.constant 0 : i32
    return %c0_i32, %c0_i32_0 : i32, i32
  }
  func.func @transform_3(%arg0: i32) -> (i32, i32) {
    %c0_i32 = arith.constant 0 : i32
    %c0_i32_0 = arith.constant 0 : i32
    %c0_i32_1 = arith.constant 0 : i32
    return %c0_i32, %c0_i32_0 : i32, i32
  }
  func.func @transform_4(%arg0: i32) -> (i32, i32) {
    %c0_i32 = arith.constant 0 : i32
    %c0_i32_0 = arith.constant 0 : i32
    %c0_i32_1 = arith.constant 0 : i32
    return %c0_i32, %c0_i32_0 : i32, i32
  }
  func.func @transform_5(%arg0: i32) -> (i32, i32) {
    %c0_i32 = arith.constant 0 : i32
    %c0_i32_0 = arith.constant 0 : i32
    %c0_i32_1 = arith.constant 0 : i32
    return %c0_i32, %c0_i32_0 : i32, i32
  }
  func.func @transform_6(%arg0: i32) -> (i32, i32) {
    %c0_i32 = arith.constant 0 : i32
    %c0_i32_0 = arith.constant 0 : i32
    %c0_i32_1 = arith.constant 0 : i32
    return %c0_i32, %c0_i32_0 : i32, i32
  }
  func.func @transform_7(%arg0: i32) -> (i32, i32) {
    %c0_i32 = arith.constant 0 : i32
    %c0_i32_0 = arith.constant 0 : i32
    return %arg0, %c0_i32 : i32, i32
  }
}

</mosaic_0001>

<llo_original>
// kernel: tpu_custom_call.1
$region0: #{tpu_custom_call.1}
  #allocation0 [shape = 'u32[]', space=smem, size = 0x4, offset = 0x4, fixed_abs, tag = 'smem constant byte address 0x4 - core index']
  #allocation1 [shape = 'u32[72,128]{1,0:T(1,128)}', space=vmem, size = 0x9000, scoped, tag = 'internal scratch']
  %s0 = inlined_call_operand.vmem [shape: f32[8,32], index: 0, kind: input, shape index: {}]
  %s1 = inlined_call_operand.vmem [shape: f32[32,64], index: 1, kind: input, shape index: {}]
  %s2 = inlined_call_operand.vmem [shape: f32[1,64], index: 2, kind: input, shape index: {}]
  %s3 = inlined_call_operand.vmem [shape: f32[64,48], index: 3, kind: input, shape index: {}]
  %s4 = inlined_call_operand.vmem [shape: f32[1,48], index: 4, kind: input, shape index: {}]
  %s5 = inlined_call_operand.vmem [shape: f32[48,16], index: 5, kind: input, shape index: {}]
  %s6 = inlined_call_operand.vmem [shape: f32[1,16], index: 6, kind: input, shape index: {}]
  %s7 = inlined_call_operand.hbm [shape: f32[8,16], index: 7, kind: output, shape index: {}]
  %s8 = sld [smem:[#allocation0]]
  $region38: #{tpu_custom_call.1} parent=0
    _
  %s10 = ssub.s32 1, %s8
  %s11 = scalar_select 0, %s10, %s8
  $region1: #{tpu_custom_call.1} parent=0
    #allocation2 [shape = 'u8[4096]{0}', space=vmem, size = 0x1000, scoped, tag = 'output window, operand 0, single buffered']
    #allocation3 [shape = 's32[1]{0}', space=sflag, size = 0x4, scoped, tag = 'scoped memory for tpu_custom_call.1']
    %12 = vsyncpa [#allocation3], 0
    // Predicated region
    $region2: #{tpu_custom_call.1} parent=1 // pred_check
      _
    $region3: #{tpu_custom_call.1} parent=1 // pred_check_branch
      %14 = sbr.rel (0) target = $region5
    $region4: #{tpu_custom_call.1} parent=1 // pred_region
      _
    $region5: #{tpu_custom_call.1} parent=1 // pred_fallthru
      _
    // Predicated region
    $region6: #{tpu_custom_call.1} parent=1 // pred_check
      _
    $region7: #{tpu_custom_call.1} parent=1 // pred_check_branch
      %16 = sbr.rel (0) target = $region9
    $region8: #{tpu_custom_call.1} parent=1 // pred_region
      _
    $region9: #{tpu_custom_call.1} parent=1 // pred_fallthru
      _
    // Predicated region
    $region10: #{tpu_custom_call.1} parent=1 // pred_check
      _
    $region11: #{tpu_custom_call.1} parent=1 // pred_check_branch
      %18 = sbr.rel (0) target = $region13
    $region12: #{tpu_custom_call.1} parent=1 // pred_region
      _
    $region13: #{tpu_custom_call.1} parent=1 // pred_fallthru
      _
    // Predicated region
    $region14: #{tpu_custom_call.1} parent=1 // pred_check
      _
    $region15: #{tpu_custom_call.1} parent=1 // pred_check_branch
      %20 = sbr.rel (0) target = $region17
    $region16: #{tpu_custom_call.1} parent=1 // pred_region
      _
    $region17: #{tpu_custom_call.1} parent=1 // pred_fallthru
      _
    // Predicated region
    $region18: #{tpu_custom_call.1} parent=1 // pred_check
      _
    $region19: #{tpu_custom_call.1} parent=1 // pred_check_branch
      %22 = sbr.rel (0) target = $region21
    $region20: #{tpu_custom_call.1} parent=1 // pred_region
      _
    $region21: #{tpu_custom_call.1} parent=1 // pred_fallthru
      _
    // Predicated region
    $region22: #{tpu_custom_call.1} parent=1 // pred_check
      _
    $region23: #{tpu_custom_call.1} parent=1 // pred_check_branch
      %24 = sbr.rel (0) target = $region25
    $region24: #{tpu_custom_call.1} parent=1 // pred_region
      _
    $region25: #{tpu_custom_call.1} parent=1 // pred_fallthru
      _
    // Predicated region
    $region26: #{tpu_custom_call.1} parent=1 // pred_check
      _
    $region27: #{tpu_custom_call.1} parent=1 // pred_check_branch
      %26 = sbr.rel (0) target = $region29
    $region28: #{tpu_custom_call.1} parent=1 // pred_region
      _
    $region29: #{tpu_custom_call.1} parent=1 // pred_fallthru
      _
    %v27 = vld [vmem:[%s0] sm:$0xff]
    %v28 = vld [vmem:[%s1] sm:$0xff]
    %v29 = vld [vmem:[%s1 + $0x8] sm:$0xff]
    %v30 = vld [vmem:[%s1 + $0x10] sm:$0xff]
    %v31 = vld [vmem:[%s1 + $0x18] sm:$0xff]
    %v32 = vld [vmem:[%s2] sm:$0x1]
    %v34 = vperm.slane %v32, 0
    %vm36 = vcmask 261120
    %v38 = vsel %vm36, %v27, 0
    %40 = vmatpush.msra.mxu0 0.0
    %41 = vmatpush.msra.mxu0 0.0
    %42 = vmatpush.msra.mxu0 0.0
    %43 = vmatpush.msra.mxu0 0.0
    %44 = vmatpush.msra.mxu0 0.0
    %45 = vmatpush.msra.mxu0 0.0
    %46 = vmatpush.msra.mxu0 0.0
    %47 = vmatpush.msra.mxu0 0.0
    %48 = vmatpush.msra.mxu0 0.0
    %49 = vmatpush.msra.mxu0 0.0
    %50 = vmatpush.msra.mxu0 0.0
    %51 = vmatpush.msra.mxu0 0.0
    %52 = vmatpush.msra.mxu0 %v31
    %53 = vmatpush.msra.mxu0 %v30
    %54 = vmatpush.msra.mxu0 %v29
    %55 = vmatpush.msra.mxu0 %v28
    %56 = vmatmul.f32.gmra.mxu0 %v38
    %v57 = vpop.f32.mrf.mxu0
    %v58 = vadd.f32 %v34, %v57
    %59 = vdwg.mxu0
    %v60 = vmax.f32 %v58, 0.0
    %v61 = vld [vmem:[%s3] sm:$0xff]
    %v62 = vld [vmem:[%s3 + $0x8] sm:$0xff]
    %v63 = vld [vmem:[%s3 + $0x10] sm:$0xff]
    %v64 = vld [vmem:[%s3 + $0x18] sm:$0xff]
    %v65 = vld [vmem:[%s3 + $0x20] sm:$0xff]
    %v66 = vld [vmem:[%s3 + $0x28] sm:$0xff]
    %v67 = vld [vmem:[%s3 + $0x30] sm:$0xff]
    %v68 = vld [vmem:[%s3 + $0x38] sm:$0xff]
    %v69 = vld [vmem:[%s4] sm:$0x1]
    %v71 = vperm.slane %v69, 0
    %vm73 = vcmask 523264
    %v75 = vsel %vm73, %v60, 0
    %77 = vmatpush.msra.mxu0 0.0
    %78 = vmatpush.msra.mxu0 0.0
    %79 = vmatpush.msra.mxu0 0.0
    %80 = vmatpush.msra.mxu0 0.0
    %81 = vmatpush.msra.mxu0 0.0
    %82 = vmatpush.msra.mxu0 0.0
    %83 = vmatpush.msra.mxu0 0.0
    %84 = vmatpush.msra.mxu0 0.0
    %85 = vmatpush.msra.mxu0 %v68
    %86 = vmatpush.msra.mxu0 %v67
    %87 = vmatpush.msra.mxu0 %v66
    %88 = vmatpush.msra.mxu0 %v65
    %89 = vmatpush.msra.mxu0 %v64
    %90 = vmatpush.msra.mxu0 %v63
    %91 = vmatpush.msra.mxu0 %v62
    %92 = vmatpush.msra.mxu0 %v61
    %93 = vmatmul.f32.gmra.mxu0 %v75
    %v94 = vpop.f32.mrf.mxu0
    %v95 = vadd.f32 %v71, %v94
    %96 = vdwg.mxu0
    %v97 = vmax.f32 %v95, 0.0
    %v98 = vld [vmem:[%s5] sm:$0xff]
    %v99 = vld [vmem:[%s5 + $0x8] sm:$0xff]
    %v100 = vld [vmem:[%s5 + $0x10] sm:$0xff]
    %v101 = vld [vmem:[%s5 + $0x18] sm:$0xff]
    %v102 = vld [vmem:[%s5 + $0x20] sm:$0xff]
    %v103 = vld [vmem:[%s5 + $0x28] sm:$0xff]
    %v104 = vld [vmem:[%s6] sm:$0x1]
    %v106 = vperm.slane %v104, 0
    %vm108 = vcmask 392192
    %v110 = vsel %vm108, %v97, 0
    %112 = vmatpush.msra.mxu0 0.0
    %113 = vmatpush.msra.mxu0 0.0
    %114 = vmatpush.msra.mxu0 0.0
    %115 = vmatpush.msra.mxu0 0.0
    %116 = vmatpush.msra.mxu0 0.0
    %117 = vmatpush.msra.mxu0 0.0
    %118 = vmatpush.msra.mxu0 0.0
    %119 = vmatpush.msra.mxu0 0.0
    %120 = vmatpush.msra.mxu0 0.0
    %121 = vmatpush.msra.mxu0 0.0
    %122 = vmatpush.msra.mxu0 %v103
    %123 = vmatpush.msra.mxu0 %v102
    %124 = vmatpush.msra.mxu0 %v101
    %125 = vmatpush.msra.mxu0 %v100
    %126 = vmatpush.msra.mxu0 %v99
    %127 = vmatpush.msra.mxu0 %v98
    %128 = vmatmul.f32.gmra.mxu0 %v110
    %v129 = vpop.f32.mrf.mxu0
    %v130 = vadd.f32 %v106, %v129
    %131 = vdwg.mxu0
    %vm132 = vcmask 130048
    %133 = vst.msk [vmem:[#allocation2] sm:$0xff] %vm132, %v130
    // Predicated region
    $region30: #{tpu_custom_call.1} parent=1 // pred_check
      _
    $region31: #{tpu_custom_call.1} parent=1 // pred_check_branch
      %135 = sbr.rel (0) target = $region33
    $region32: #{tpu_custom_call.1} parent=1 // pred_region
      %137 = vsyncadd [#allocation3], 0
      %s139 = sshll.u32 [#allocation2], 4
      %s140 = int_to_ptr.vmem [resolvable:$true] %s139
      %s141 = sshll.u32 %s7, 4
      %s142 = int_to_ptr.hbm [resolvable:$true] %s141
      %144 = dma.vmem_to_hbm [thread:$0]  %s140, 128, %s142, [#allocation3]
    $region33: #{tpu_custom_call.1} parent=1 // pred_fallthru
      _
    // Predicated region
    $region34: #{tpu_custom_call.1} parent=1 // pred_check
      _
    $region35: #{tpu_custom_call.1} parent=1 // pred_check_branch
      %146 = sbr.rel (0) target = $region37
    $region36: #{tpu_custom_call.1} parent=1 // pred_region
      %148 = dma.done [#allocation3], 128
    $region37: #{tpu_custom_call.1} parent=1 // pred_fallthru
      _
    %149 = vsyncpa [#allocation3], 1

</llo_original>
